<compile_context>
chip_gen: v7x
topology: tpu7x:2x2x1
jax: 0.10.0
libtpu: 0.0.40
codegen_flags: <defaults>
</compile_context>

<pallas_src>
import functools

import jax
import jax.numpy as jnp
from jax.experimental import pallas as pl
from jax.experimental.pallas import tpu as pltpu

_LANES = 128


def _l2loss_kernel(out_ref, tgt_ref, partial_ref, *, n_channels, tile_rows,
                   acc_rows, fold, total_rows):
    # out_ref / tgt_ref: (C, TILE_R, 128) VMEM tiles of one sample's planes.
    # partial_ref:       (acc_rows, 128) f32 per-sample output block, resident
    #                    across the row-tile axis and accumulated in place.
    r = pl.program_id(1)

    @pl.when(r == 0)
    def _():
        partial_ref[...] = jnp.zeros_like(partial_ref)

    # Channel sum of squared differences, unrolled on the VPU (C is tiny: 2-4).
    sq = None
    for c in range(n_channels):
        d = out_ref[c].astype(jnp.float32) - tgt_ref[c].astype(jnp.float32)
        sq = d * d if sq is None else sq + d * d
    norm = jnp.sqrt(sq)  # per-pixel L2 norm over channels, (TILE_R, 128)

    def fold_rows(x):
        # Fold the sublane axis to a vreg-scale (acc_rows, 128) contribution.
        if fold == 1:
            return x
        return x.reshape(fold, acc_rows, x.shape[-1]).sum(axis=0)

    if total_rows % tile_rows != 0:
        # A partial tail tile exists: only that step pays for the mask (gated).
        is_tail = r == pl.num_programs(1) - 1

        @pl.when(is_tail)
        def _():
            rows = r * tile_rows + jax.lax.broadcasted_iota(
                jnp.int32, norm.shape, 0)
            masked = jnp.where(rows < total_rows, norm, 0.0)
            partial_ref[...] += fold_rows(masked)

        @pl.when(jnp.logical_not(is_tail))
        def _():
            partial_ref[...] += fold_rows(norm)
    else:
        partial_ref[...] += fold_rows(norm)


def _vmem_capacity_bytes():
    try:
        info = pltpu.get_tpu_info()
        cap = getattr(info, "vmem_capacity_bytes", None)
        if cap:
            return int(cap)
    except Exception:
        pass
    return 64 << 20  # conservative fallback: v7x per-TensorCore VMEM


def l2loss(output, target):
    """output, target: (N, C, H, W) arrays. Returns [L2 scalar, EPE scalar]."""
    assert output.shape == target.shape
    N, C, H, W = output.shape
    P = H * W
    dtype_bytes = jnp.dtype(output.dtype).itemsize

    # --- lane-dense layout: view each contiguous HxW plane as (R, 128) ------
    p_pad = pl.cdiv(P, _LANES) * _LANES
    out_flat = output.reshape(N, C, P)
    tgt_flat = target.reshape(N, C, P)
    if p_pad != P:
        # TODO(synk): this zero-pad copies the inputs once (extra HBM traffic);
        # zeros contribute exactly 0 to the sum so no in-kernel mask is needed.
        pad = p_pad - P
        out_flat = jnp.pad(out_flat, ((0, 0), (0, 0), (0, pad)))
        tgt_flat = jnp.pad(tgt_flat, ((0, 0), (0, 0), (0, pad)))
    R = p_pad // _LANES
    out4 = out_flat.reshape(N, C, R, _LANES)
    tgt4 = tgt_flat.reshape(N, C, R, _LANES)

    # --- row-tile size from the VMEM budget ----------------------------------
    vmem_cap = _vmem_capacity_bytes()
    input_budget = int(vmem_cap * 0.45)  # 2 inputs x 2 pipeline buffers
    bytes_per_tile_row = 4 * C * _LANES * dtype_bytes
    cap_rows = max(8, (input_budget // bytes_per_tile_row) // 8 * 8)
    if R < 8:
        tile_rows = R
    else:
        tile_rows = min(cap_rows, (R // 8) * 8)
    n_row_tiles = pl.cdiv(R, tile_rows)
    acc_rows = min(8, tile_rows)
    fold = tile_rows // acc_rows

    footprint = (4 * C * tile_rows * _LANES * dtype_bytes
                 + 2 * acc_rows * _LANES * 4)
    vmem_limit = int(min(vmem_cap, max(32 << 20, footprint + (8 << 20))))

    cost = pl.CostEstimate(
        flops=3 * N * C * p_pad + N * p_pad,
        transcendentals=N * p_pad,
        bytes_accessed=2 * N * C * p_pad * dtype_bytes
        + N * acc_rows * _LANES * 4,
    )

    kernel = functools.partial(
        _l2loss_kernel,
        n_channels=C,
        tile_rows=tile_rows,
        acc_rows=acc_rows,
        fold=fold,
        total_rows=R,
    )

    in_spec = pl.BlockSpec((None, C, tile_rows, _LANES),
                           lambda n, r: (n, 0, r, 0))

    partials = pl.pallas_call(
        kernel,
        out_shape=jax.ShapeDtypeStruct((N, acc_rows, _LANES), jnp.float32),
        grid_spec=pltpu.PrefetchScalarGridSpec(
            num_scalar_prefetch=0,
            grid=(N, n_row_tiles),
            in_specs=[in_spec, in_spec],
            out_specs=pl.BlockSpec((None, acc_rows, _LANES),
                                   lambda n, r: (n, 0, 0)),
        ),
        compiler_params=pltpu.CompilerParams(
            dimension_semantics=("parallel", "arbitrary"),
            vmem_limit_bytes=vmem_limit),
        cost_estimate=cost,
    )(out4, tgt4)

    loss = jnp.sum(partials) / jnp.float32(N * H * W)
    # EPE_flow(output, target) is mathematically identical; duplicate it.
    return [loss, loss]


if __name__ == "__main__":
    key = jax.random.PRNGKey(0)
    k1, k2 = jax.random.split(key)
    # flow-like tensors: batch=2, channels=4, spatial=16x16
    output = jax.random.normal(k1, (2, 4, 16, 16), dtype=jnp.float32)
    target = jax.random.normal(k2, (2, 4, 16, 16), dtype=jnp.float32)

    losses = l2loss(output, target)
    losses = [jax.block_until_ready(v) for v in losses]

    # reference check in plain JAX
    diff = output - target
    ref = jnp.mean(jnp.sqrt(jnp.sum(diff * diff, axis=1)))
    assert jnp.allclose(losses[0], ref, rtol=1e-5, atol=1e-5)
    assert jnp.allclose(losses[1], ref, rtol=1e-5, atol=1e-5)

    print("KERNEL_OK")
</pallas_src>

<mosaic_0001>
module attributes {stable_mosaic.version = 11 : i64} {
  func.func @_l2loss_kernel(%arg0: i32, %arg1: i32, %arg2: memref<1x4x2x128xf32, #tpu.memory_space<vmem>>, %arg3: memref<1x4x2x128xf32, #tpu.memory_space<vmem>>, %arg4: memref<1x2x128xf32, #tpu.memory_space<vmem>>) attributes {dimension_semantics = [#tpu.dimension_semantics<parallel>, #tpu.dimension_semantics<arbitrary>], iteration_bounds = array<i64: 2, 1>, scalar_prefetch = 0 : i64, scratch_operands = 0 : i64, tpu.core_type = #tpu.core_type<tc>, window_params = [{transform_indices = @transform_0, window_bounds = array<i64: 1, 4, 2, 128>}, {transform_indices = @transform_1, window_bounds = array<i64: 1, 4, 2, 128>}, {transform_indices = @transform_2, window_bounds = array<i64: 1, 2, 128>}]} {
    %c0_i32 = arith.constant 0 : i32
    %0 = arith.cmpi eq, %arg1, %c0_i32 : i32
    %1 = arith.extui %0 : i1 to i32
    %c0_i32_0 = arith.constant 0 : i32
    %2 = arith.cmpi ne, %1, %c0_i32_0 : i32
    scf.if %2 {
      %cst = arith.constant 0.000000e+00 : f32
      %37 = vector.broadcast %cst : f32 to vector<2x128xf32>
      %c0_35 = arith.constant 0 : index
      %c0_36 = arith.constant 0 : index
      %c0_37 = arith.constant 0 : index
      %38 = vector.load %arg4[%c0_35, %c0_36, %c0_37] : memref<1x2x128xf32, #tpu.memory_space<vmem>>, vector<1x2x128xf32>
      %39 = vector.shape_cast %38 : vector<1x2x128xf32> to vector<2x128xf32>
      %40 = vector.shape_cast %37 : vector<2x128xf32> to vector<1x2x128xf32>
      tpu.vector_store %arg4[%c0_35, %c0_36, %c0_37], %40 {strides = array<i32>} : memref<1x2x128xf32, #tpu.memory_space<vmem>>, vector<1x2x128xf32>,
    } else {
    }
    %c0 = arith.constant 0 : index
    %c0_1 = arith.constant 0 : index
    %c0_2 = arith.constant 0 : index
    %c0_3 = arith.constant 0 : index
    %3 = vector.load %arg2[%c0, %c0_1, %c0_2, %c0_3] : memref<1x4x2x128xf32, #tpu.memory_space<vmem>>, vector<1x1x2x128xf32>
    %4 = vector.shape_cast %3 : vector<1x1x2x128xf32> to vector<2x128xf32>
    %c0_4 = arith.constant 0 : index
    %c0_5 = arith.constant 0 : index
    %c0_6 = arith.constant 0 : index
    %c0_7 = arith.constant 0 : index
    %5 = vector.load %arg3[%c0_4, %c0_5, %c0_6, %c0_7] : memref<1x4x2x128xf32, #tpu.memory_space<vmem>>, vector<1x1x2x128xf32>
    %6 = vector.shape_cast %5 : vector<1x1x2x128xf32> to vector<2x128xf32>
    %7 = arith.subf %4, %6 : vector<2x128xf32>
    %8 = arith.mulf %7, %7 : vector<2x128xf32>
    %c0_8 = arith.constant 0 : index
    %c1 = arith.constant 1 : index
    %c0_9 = arith.constant 0 : index
    %c0_10 = arith.constant 0 : index
    %9 = vector.load %arg2[%c0_8, %c1, %c0_9, %c0_10] : memref<1x4x2x128xf32, #tpu.memory_space<vmem>>, vector<1x1x2x128xf32>
    %10 = vector.shape_cast %9 : vector<1x1x2x128xf32> to vector<2x128xf32>
    %c0_11 = arith.constant 0 : index
    %c1_12 = arith.constant 1 : index
    %c0_13 = arith.constant 0 : index
    %c0_14 = arith.constant 0 : index
    %11 = vector.load %arg3[%c0_11, %c1_12, %c0_13, %c0_14] : memref<1x4x2x128xf32, #tpu.memory_space<vmem>>, vector<1x1x2x128xf32>
    %12 = vector.shape_cast %11 : vector<1x1x2x128xf32> to vector<2x128xf32>
    %13 = arith.subf %10, %12 : vector<2x128xf32>
    %14 = arith.mulf %13, %13 : vector<2x128xf32>
    %15 = arith.addf %8, %14 : vector<2x128xf32>
    %c0_15 = arith.constant 0 : index
    %c2 = arith.constant 2 : index
    %c0_16 = arith.constant 0 : index
    %c0_17 = arith.constant 0 : index
    %16 = vector.load %arg2[%c0_15, %c2, %c0_16, %c0_17] : memref<1x4x2x128xf32, #tpu.memory_space<vmem>>, vector<1x1x2x128xf32>
    %17 = vector.shape_cast %16 : vector<1x1x2x128xf32> to vector<2x128xf32>
    %c0_18 = arith.constant 0 : index
    %c2_19 = arith.constant 2 : index
    %c0_20 = arith.constant 0 : index
    %c0_21 = arith.constant 0 : index
    %18 = vector.load %arg3[%c0_18, %c2_19, %c0_20, %c0_21] : memref<1x4x2x128xf32, #tpu.memory_space<vmem>>, vector<1x1x2x128xf32>
    %19 = vector.shape_cast %18 : vector<1x1x2x128xf32> to vector<2x128xf32>
    %20 = arith.subf %17, %19 : vector<2x128xf32>
    %21 = arith.mulf %20, %20 : vector<2x128xf32>
    %22 = arith.addf %15, %21 : vector<2x128xf32>
    %c0_22 = arith.constant 0 : index
    %c3 = arith.constant 3 : index
    %c0_23 = arith.constant 0 : index
    %c0_24 = arith.constant 0 : index
    %23 = vector.load %arg2[%c0_22, %c3, %c0_23, %c0_24] : memref<1x4x2x128xf32, #tpu.memory_space<vmem>>, vector<1x1x2x128xf32>
    %24 = vector.shape_cast %23 : vector<1x1x2x128xf32> to vector<2x128xf32>
    %c0_25 = arith.constant 0 : index
    %c3_26 = arith.constant 3 : index
    %c0_27 = arith.constant 0 : index
    %c0_28 = arith.constant 0 : index
    %25 = vector.load %arg3[%c0_25, %c3_26, %c0_27, %c0_28] : memref<1x4x2x128xf32, #tpu.memory_space<vmem>>, vector<1x1x2x128xf32>
    %26 = vector.shape_cast %25 : vector<1x1x2x128xf32> to vector<2x128xf32>
    %27 = arith.subf %24, %26 : vector<2x128xf32>
    %28 = arith.mulf %27, %27 : vector<2x128xf32>
    %29 = arith.addf %22, %28 : vector<2x128xf32>
    %30 = math.sqrt %29 : vector<2x128xf32>
    %c0_29 = arith.constant 0 : index
    %c0_30 = arith.constant 0 : index
    %c0_31 = arith.constant 0 : index
    %31 = vector.load %arg4[%c0_29, %c0_30, %c0_31] : memref<1x2x128xf32, #tpu.memory_space<vmem>>, vector<1x2x128xf32>
    %32 = vector.shape_cast %31 : vector<1x2x128xf32> to vector<2x128xf32>
    %33 = arith.addf %32, %30 : vector<2x128xf32>
    %c0_32 = arith.constant 0 : index
    %c0_33 = arith.constant 0 : index
    %c0_34 = arith.constant 0 : index
    %34 = vector.load %arg4[%c0_32, %c0_33, %c0_34] : memref<1x2x128xf32, #tpu.memory_space<vmem>>, vector<1x2x128xf32>
    %35 = vector.shape_cast %34 : vector<1x2x128xf32> to vector<2x128xf32>
    %36 = vector.shape_cast %33 : vector<2x128xf32> to vector<1x2x128xf32>
    tpu.vector_store %arg4[%c0_32, %c0_33, %c0_34], %36 {strides = array<i32>} : memref<1x2x128xf32, #tpu.memory_space<vmem>>, vector<1x2x128xf32>,
    return
  }
  func.func @transform_0(%arg0: i32, %arg1: i32) -> (i32, i32, i32, i32) {
    %c0_i32 = arith.constant 0 : i32
    %c0_i32_0 = arith.constant 0 : i32
    %c0_i32_1 = arith.constant 0 : i32
    return %arg0, %c0_i32, %arg1, %c0_i32_0 : i32, i32, i32, i32
  }
  func.func @transform_1(%arg0: i32, %arg1: i32) -> (i32, i32, i32, i32) {
    %c0_i32 = arith.constant 0 : i32
    %c0_i32_0 = arith.constant 0 : i32
    %c0_i32_1 = arith.constant 0 : i32
    return %arg0, %c0_i32, %arg1, %c0_i32_0 : i32, i32, i32, i32
  }
  func.func @transform_2(%arg0: i32, %arg1: i32) -> (i32, i32, i32) {
    %c0_i32 = arith.constant 0 : i32
    %c0_i32_0 = arith.constant 0 : i32
    %c0_i32_1 = arith.constant 0 : i32
    return %arg0, %c0_i32, %c0_i32_0 : i32, i32, i32
  }
}

</mosaic_0001>

<llo_original>
// kernel: tpu_custom_call.1
$region0: #{tpu_custom_call.1}
  #allocation0 [shape = 'u32[]', space=smem, size = 0x4, offset = 0x4, fixed_abs, tag = 'smem constant byte address 0x4 - core index']
  #allocation1 [shape = 'u32[144,128]{1,0:T(1,128)}', space=vmem, size = 0x12000, scoped, tag = 'internal scratch']
  %s0 = inlined_call_operand.hbm [shape: f32[2,4,2,128], index: 0, kind: input, shape index: {}]
  %s1 = inlined_call_operand.hbm [shape: f32[2,4,2,128], index: 1, kind: input, shape index: {}]
  %s2 = inlined_call_operand.hbm [shape: f32[2,2,128], index: 2, kind: output, shape index: {}]
  %s3 = sld [smem:[#allocation0]]
  $region53: #{tpu_custom_call.1} parent=0
    _
  %s5 = ssub.s32 1, %s3
  %s6 = scalar_select 0, %s5, %s3
  $region1: #{tpu_custom_call.1} parent=0
    #allocation2 [shape = 'u8[8192]{0}', space=vmem, size = 0x2000, scoped, tag = 'input window, operand 0']
    #allocation3 [shape = 's32[2]{0}', space=sflag, size = 0x8, scoped, tag = 'scoped memory for tpu_custom_call.1']
    #allocation4 [shape = 's32[2]{0}', space=sflag, size = 0x8, scoped, tag = 'scoped memory for tpu_custom_call.1']
    #allocation5 [shape = 'u8[8192]{0}', space=vmem, size = 0x2000, scoped, tag = 'input window, operand 1']
    #allocation6 [shape = 's32[2]{0}', space=sflag, size = 0x8, scoped, tag = 'scoped memory for tpu_custom_call.1']
    #allocation7 [shape = 'u8[2048]{0}', space=vmem, size = 0x800, scoped, tag = 'output window, operand 0']
    %7 = vsyncpa [#allocation3], 0
    %s8 = scalar_lea.sflag [#allocation3], 1
    %9 = vsyncpa %s8, 0
    %10 = vsyncpa [#allocation6], 0
    %s11 = scalar_lea.sflag [#allocation6], 1
    %12 = vsyncpa %s11, 0
    %13 = vsyncpa [#allocation4], 0
    %s14 = scalar_lea.sflag [#allocation4], 1
    %15 = vsyncpa %s14, 0
    loop: start=0, step=1, limit=4
    $region2: #{tpu_custom_call.1} parent=1 // loop_pre_header
      _
    $region3: #{tpu_custom_call.1} parent=1 // loop_header
      %s17 = sphi 0, %s21
      %p18 = scmp.ge.s32.totalorder %s17, 4
      %s24 = sphi 0, %s36
      %s25 = sphi 0, %s32
      %s26 = sphi 0, %s24
      %s27 = sphi 0, %s25
      %s28 = sphi 0, %s26
      %s29 = sphi 0, %s27
      %s41 = sphi 0, %s43
      %s44 = sphi 0, %s41
      %s45 = sphi 0, %s44
      %s61 = sphi 0, %s45
      %s69 = sphi 0, %s71
      %s72 = sphi 0, %s69
      %s73 = sphi 0, %s72
      %s89 = sphi 0, %s73
      %s95 = sphi 0, %s97
      %s98 = sphi 0, %s95
      %s99 = sphi 0, %s98
      %s115 = sphi 0, %s99
    $region4: #{tpu_custom_call.1} parent=1 // loop_header_branch
      %20 = sbr.rel (%p18) target = $region8
    $region5: #{tpu_custom_call.1} parent=1 // loop_body
      %s22 = ssub.s32 %s17, 1
      %s23 = ssub.s32 %s17, 2
      %s30 = sadd.s32 1, %s25
      %p31 = scmp.ge.s32.totalorder %s30, 1
      %s32 = scalar_select %p31, 0, %s30
      %s33 = sadd.s32 1, %s24
      %s34 = scalar_select %p31, %s33, %s24
      %p35 = scmp.ge.s32.totalorder %s34, 2
      %s36 = scalar_select %p35, 0, %s34
      %s37 = ssub.s32 %s24, %s36
      %s38 = ssub.s32 %s25, %s32
      %s39 = sor.u32 %s37, %s38
      %p40 = scmp.eq.s32.totalorder %s39, 0
      %s42 = sadd.s32 %s41, 1
      %s43 = scalar_select %p40, %s41, %s42
      %p46 = pneg %p40
      %p47 = scmp.eq.s32.totalorder %s17, 1
      %p48 = por %p46, %p47
      %p49 = scmp.ne.s32.totalorder %s41, %s44
      %p50 = scmp.eq.s32.totalorder %s17, 0
      %p51 = por %p49, %p50
      %p52 = scmp.ne.s32.totalorder %s41, %s44
      %p53 = scmp.eq.s32.totalorder %s22, 1
      %p54 = por %p52, %p53
      %p55 = scmp.ne.s32.totalorder %s44, %s45
      %p56 = scmp.eq.s32.totalorder %s22, 0
      %p57 = por %p55, %p56
      %p58 = scmp.ne.s32.totalorder %s44, %s45
      %p59 = scmp.eq.s32.totalorder %s23, 1
      %p60 = por %p58, %p59
      %p62 = scmp.ne.s32.totalorder %s45, %s61
      %p63 = scmp.eq.s32.totalorder %s23, 0
      %p64 = por %p62, %p63
      %s65 = ssub.s32 %s24, %s36
      %s66 = ssub.s32 %s25, %s32
      %s67 = sor.u32 %s65, %s66
      %p68 = scmp.eq.s32.totalorder %s67, 0
      %s70 = sadd.s32 %s69, 1
      %s71 = scalar_select %p68, %s69, %s70
      %p74 = pneg %p68
      %p75 = scmp.eq.s32.totalorder %s17, 1
      %p76 = por %p74, %p75
      %p77 = scmp.ne.s32.totalorder %s69, %s72
      %p78 = scmp.eq.s32.totalorder %s17, 0
      %p79 = por %p77, %p78
      %p80 = scmp.ne.s32.totalorder %s69, %s72
      %p81 = scmp.eq.s32.totalorder %s22, 1
      %p82 = por %p80, %p81
      %p83 = scmp.ne.s32.totalorder %s72, %s73
      %p84 = scmp.eq.s32.totalorder %s22, 0
      %p85 = por %p83, %p84
      %p86 = scmp.ne.s32.totalorder %s72, %s73
      %p87 = scmp.eq.s32.totalorder %s23, 1
      %p88 = por %p86, %p87
      %p90 = scmp.ne.s32.totalorder %s73, %s89
      %p91 = scmp.eq.s32.totalorder %s23, 0
      %p92 = por %p90, %p91
      %s93 = ssub.s32 %s24, %s36
      %p94 = scmp.eq.s32.totalorder %s93, 0
      %s96 = sadd.s32 %s95, 1
      %s97 = scalar_select %p94, %s95, %s96
      %p100 = pneg %p94
      %p101 = scmp.eq.s32.totalorder %s17, 1
      %p102 = por %p100, %p101
      %p103 = scmp.ne.s32.totalorder %s95, %s98
      %p104 = scmp.eq.s32.totalorder %s17, 0
      %p105 = por %p103, %p104
      %p106 = scmp.ne.s32.totalorder %s95, %s98
      %p107 = scmp.eq.s32.totalorder %s22, 1
      %p108 = por %p106, %p107
      %p109 = scmp.ne.s32.totalorder %s98, %s99
      %p110 = scmp.eq.s32.totalorder %s22, 0
      %p111 = por %p109, %p110
      %p112 = scmp.ne.s32.totalorder %s98, %s99
      %p113 = scmp.eq.s32.totalorder %s23, 1
      %p114 = por %p112, %p113
      %p116 = scmp.ne.s32.totalorder %s99, %s115
      %p117 = scmp.eq.s32.totalorder %s23, 0
      %p118 = por %p116, %p117
      %p119 = scmp.le.s32.totalorder 1, %s17
      %p120 = scmp.lt.s32.totalorder %s17, 3
      %p121 = pnand %p119, %p120
      %p122 = pneg %p121
      // Predicated region
      $region9: #{tpu_custom_call.1} parent=5 // pred_check
        _
      $region10: #{tpu_custom_call.1} parent=5 // pred_check_branch
        %124 = sbr.rel (%p121) target = $region12
      $region11: #{tpu_custom_call.1} parent=5 // pred_region
        %s125 = ssub.s32 %s17, 1
      $region12: #{tpu_custom_call.1} parent=5 // pred_fallthru
        _
      %p126 = scmp.lt.s32.totalorder %s17, 2
      // Predicated region
      $region13: #{tpu_custom_call.1} parent=5 // pred_check
        %p127 = pneg %p126
      $region14: #{tpu_custom_call.1} parent=5 // pred_check_branch
        %129 = sbr.rel (%p127) target = $region16
      $region15: #{tpu_custom_call.1} parent=5 // pred_region
        // Predicated region
        $region17: #{tpu_custom_call.1} parent=15 // pred_check
          %p130 = pneg %p51
        $region18: #{tpu_custom_call.1} parent=15 // pred_check_branch
          %132 = sbr.rel (%p130) target = $region20
        $region19: #{tpu_custom_call.1} parent=15 // pred_region
          %s133 = sand.u32 %s41, 1
          %s134 = scalar_lea.sflag [#allocation3], %s133
          %s135 = sand.u32 %s41, 1
          %s136 = smul.addr %s135, 8
          %s137 = scalar_lea.vmem [#allocation2], %s136
          %s139 = ssub.s32 128, 128
          %140 = vsyncadd %s134, %s139
          %s141 = smul.addr %s24, 4
          %s142 = sadd.s32 %s25, %s141
          %s143 = smul.addr %s142, 32
          %s144 = scalar_lea.hbm %s0, %s143
          %s145 = sshll.u32 %s137, 4
          %s146 = int_to_ptr.vmem [resolvable:$true] %s145
          %151 = dma.hbm_to_vmem [thread:$0]  %s144, 128, %s146, %s134, 32, 32, 2
        $region20: #{tpu_custom_call.1} parent=15 // pred_fallthru
          _
        // Predicated region
        $region21: #{tpu_custom_call.1} parent=15 // pred_check
          %p152 = pneg %p79
        $region22: #{tpu_custom_call.1} parent=15 // pred_check_branch
          %154 = sbr.rel (%p152) target = $region24
        $region23: #{tpu_custom_call.1} parent=15 // pred_region
          %s155 = sand.u32 %s69, 1
          %s156 = scalar_lea.sflag [#allocation6], %s155
          %s157 = sand.u32 %s69, 1
          %s158 = smul.addr %s157, 8
          %s159 = scalar_lea.vmem [#allocation5], %s158
          %s161 = ssub.s32 128, 128
          %162 = vsyncadd %s156, %s161
          %s163 = smul.addr %s24, 4
          %s164 = sadd.s32 %s25, %s163
          %s165 = smul.addr %s164, 32
          %s166 = scalar_lea.hbm %s1, %s165
          %s167 = sshll.u32 %s159, 4
          %s168 = int_to_ptr.vmem [resolvable:$true] %s167
          %173 = dma.hbm_to_vmem [thread:$0]  %s166, 128, %s168, %s156, 32, 32, 2
        $region24: #{tpu_custom_call.1} parent=15 // pred_fallthru
          _
      $region16: #{tpu_custom_call.1} parent=5 // pred_fallthru
        _
      %p174 = scmp.le.s32.totalorder 1, %s17
      %p175 = scmp.lt.s32.totalorder %s17, 3
      %p176 = pnand %p174, %p175
      %p177 = pneg %p176
      // Predicated region
      $region25: #{tpu_custom_call.1} parent=5 // pred_check
        _
      $region26: #{tpu_custom_call.1} parent=5 // pred_check_branch
        %179 = sbr.rel (%p176) target = $region28
      $region27: #{tpu_custom_call.1} parent=5 // pred_region
        %s180 = ssub.s32 %s17, 1
        %s181 = sand.u32 %s44, 1
        %s182 = scalar_lea.sflag [#allocation3], %s181
        %s183 = sand.u32 %s44, 1
        %s184 = smul.addr %s183, 8
        %s185 = scalar_lea.vmem [#allocation2], %s184
        // Predicated region
        $region29: #{tpu_custom_call.1} parent=27 // pred_check
          %p186 = pneg %p57
        $region30: #{tpu_custom_call.1} parent=27 // pred_check_branch
          %188 = sbr.rel (%p186) target = $region32
        $region31: #{tpu_custom_call.1} parent=27 // pred_region
          %189 = dma.done %s182, 128
        $region32: #{tpu_custom_call.1} parent=27 // pred_fallthru
          _
        %s190 = sand.u32 %s72, 1
        %s191 = scalar_lea.sflag [#allocation6], %s190
        %s192 = sand.u32 %s72, 1
        %s193 = smul.addr %s192, 8
        %s194 = scalar_lea.vmem [#allocation5], %s193
        // Predicated region
        $region33: #{tpu_custom_call.1} parent=27 // pred_check
          %p195 = pneg %p85
        $region34: #{tpu_custom_call.1} parent=27 // pred_check_branch
          %197 = sbr.rel (%p195) target = $region36
        $region35: #{tpu_custom_call.1} parent=27 // pred_region
          %198 = dma.done %s191, 128
        $region36: #{tpu_custom_call.1} parent=27 // pred_fallthru
          _
        %s199 = sand.u32 %s44, 1
        %s200 = scalar_lea.sflag [#allocation3], %s199
        %s201 = sand.u32 %s44, 1
        %s202 = smul.addr %s201, 8
        %s203 = scalar_lea.vmem [#allocation2], %s202
        %p204 = pneg %p57
        %p205 = pneg %p54
        %s206 = sand.u32 %s72, 1
        %s207 = scalar_lea.sflag [#allocation6], %s206
        %s208 = sand.u32 %s72, 1
        %s209 = smul.addr %s208, 8
        %s210 = scalar_lea.vmem [#allocation5], %s209
        %p211 = pneg %p85
        %p212 = pneg %p82
        %p213 = pneg %p111
        %p214 = pneg %p108
        %s215 = sand.u32 %s98, 1
        %s216 = scalar_lea.sflag [#allocation4], %s215
        %s217 = sand.u32 %s98, 1
        %s218 = smul.addr %s217, 2
        %s219 = scalar_lea.vmem [#allocation7], %s218
        %p220 = scmp.eq.s32.totalorder %s27, 0
        // Predicated region
        $region37: #{tpu_custom_call.1} parent=27 // pred_check
          %p221 = pneg %p220
        $region38: #{tpu_custom_call.1} parent=27 // pred_check_branch
          %223 = sbr.rel (%p221) target = $region40
        $region39: #{tpu_custom_call.1} parent=27 // pred_region
          %224 = vst [vmem:[%s219] sm:$0x3] 0.0
        $region40: #{tpu_custom_call.1} parent=27 // pred_fallthru
          _
        %v225 = vld [vmem:[%s185] sm:$0x3]
        %v226 = vld [vmem:[%s194] sm:$0x3]
        %v227 = vsub.f32 %v225, %v226
        %v228 = vmul.f32 %v227, %v227
        %s229 = scalar_lea.vmem %s185, 2 [#allocation2]
        %v230 = vld [vmem:[%s229] sm:$0x3]
        %s231 = scalar_lea.vmem %s194, 2 [#allocation5]
        %v232 = vld [vmem:[%s231] sm:$0x3]
        %v233 = vsub.f32 %v230, %v232
        %v234 = vmul.f32 %v233, %v233
        %v235 = vadd.f32 %v228, %v234
        %s236 = scalar_lea.vmem %s185, 4 [#allocation2]
        %v237 = vld [vmem:[%s236] sm:$0x3]
        %s238 = scalar_lea.vmem %s194, 4 [#allocation5]
        %v239 = vld [vmem:[%s238] sm:$0x3]
        %v240 = vsub.f32 %v237, %v239
        %v241 = vmul.f32 %v240, %v240
        %v242 = vadd.f32 %v235, %v241
        %s243 = scalar_lea.vmem %s185, 6 [#allocation2]
        %v244 = vld [vmem:[%s243] sm:$0x3]
        %s245 = scalar_lea.vmem %s194, 6 [#allocation5]
        %v246 = vld [vmem:[%s245] sm:$0x3]
        %v247 = vsub.f32 %v244, %v246
        %v248 = vmul.f32 %v247, %v247
        %v249 = vadd.f32 %v242, %v248
        %v250 = vrsqrt.pop %v249
        %v251 = vmul.f32 %v249, %v250
        %vm252 = vcmp.eq.f32.partialorder %v249, inf
        %v253 = vsel %vm252, %v249, %v251
        %vm254 = vcmp.eq.f32.partialorder %v249, 0.0
        %v255 = vand.u32 %v249, 2147483648
        %v256 = vsel %vm254, %v255, %v253
        %v257 = vld [vmem:[%s219] sm:$0x3]
        %v258 = vadd.f32 %v257, %v256
        %259 = vst [vmem:[%s219] sm:$0x3] %v258
        %s260 = sand.u32 %s98, 1
        %s261 = scalar_lea.sflag [#allocation4], %s260
        %s262 = sand.u32 %s98, 1
        %s263 = smul.addr %s262, 2
        %s264 = scalar_lea.vmem [#allocation7], %s263
        // Predicated region
        $region41: #{tpu_custom_call.1} parent=27 // pred_check
          %p265 = pneg %p108
        $region42: #{tpu_custom_call.1} parent=27 // pred_check_branch
          %267 = sbr.rel (%p265) target = $region44
        $region43: #{tpu_custom_call.1} parent=27 // pred_region
          %s269 = ssub.s32 32, 32
          %270 = vsyncadd %s261, %s269
          %s271 = smul.addr %s26, 32
          %s272 = scalar_lea.hbm %s2, %s271
          %s274 = sshll.u32 %s264, 4
          %s275 = int_to_ptr.vmem [resolvable:$true] %s274
          %277 = dma.vmem_to_hbm [thread:$0]  %s275, 32, %s272, %s261
        $region44: #{tpu_custom_call.1} parent=27 // pred_fallthru
          _
      $region28: #{tpu_custom_call.1} parent=5 // pred_fallthru
        _
      %p278 = scmp.le.s32.totalorder 2, %s17
      // Predicated region
      $region45: #{tpu_custom_call.1} parent=5 // pred_check
        %p279 = pneg %p278
      $region46: #{tpu_custom_call.1} parent=5 // pred_check_branch
        %281 = sbr.rel (%p279) target = $region48
      $region47: #{tpu_custom_call.1} parent=5 // pred_region
        %s282 = ssub.s32 %s17, 2
        // Predicated region
        $region49: #{tpu_custom_call.1} parent=47 // pred_check
          %p283 = pneg %p114
        $region50: #{tpu_custom_call.1} parent=47 // pred_check_branch
          %285 = sbr.rel (%p283) target = $region52
        $region51: #{tpu_custom_call.1} parent=47 // pred_region
          %s286 = sand.u32 %s99, 1
          %s287 = scalar_lea.sflag [#allocation4], %s286
          %s288 = sand.u32 %s99, 1
          %s289 = smul.addr %s288, 2
          %s290 = scalar_lea.vmem [#allocation7], %s289
          %291 = dma.done %s287, 32
        $region52: #{tpu_custom_call.1} parent=47 // pred_fallthru
          _
      $region48: #{tpu_custom_call.1} parent=5 // pred_fallthru
        _
    $region6: #{tpu_custom_call.1} parent=1 // loop_footer
      %s21 = sadd.s32 1, %s17
    $region7: #{tpu_custom_call.1} parent=1 // loop_footer_branch
      %16 = sbr.rel target = $region3
    $region8: #{tpu_custom_call.1} parent=1 // loop_exit
      _
    %292 = vsyncpa [#allocation3], 1
    %s293 = scalar_lea.sflag [#allocation3], 1
    %294 = vsyncpa %s293, 1
    %295 = vsyncpa [#allocation6], 1
    %s296 = scalar_lea.sflag [#allocation6], 1
    %297 = vsyncpa %s296, 1
    %298 = vsyncpa [#allocation4], 1
    %s299 = scalar_lea.sflag [#allocation4], 1
    %300 = vsyncpa %s299, 1

</llo_original>
